<compile_context>
chip_gen: v7x
topology: tpu7x:2x2x1
jax: 0.10.0
libtpu: 0.0.40
codegen_flags: <defaults>
</compile_context>

<pallas_src>
import functools

import jax
import jax.numpy as jnp
from jax.experimental import pallas as pl
from jax.experimental.pallas import tpu as pltpu


def _round_up(x, m):
    return (x + m - 1) // m * m


def _cdiv(a, b):
    return -(-a // b)


# ----------------------------------------------------------------------------
# Kernel 1: fused global-average-pool + fc1(SiLU) + fc2(sigmoid).
# ----------------------------------------------------------------------------
def _se_squeeze_excite_kernel(x_ref, w1_ref, b1_ref, w2_ref, b2_ref,
                              f_ref, acc_ref, *, c, hw, thw, inv_hw, needs_mask):
    """x_ref  : (1, C, thw)  spatial tile of one batch element (HW flattened)
       w1_ref : (Sp, Cp)     fc1 weight (zero-padded), [s, c] = w1[s, c]
       b1_ref : (Sp, 1)
       w2_ref : (Cp, Sp)     fc2 weight (zero-padded), [c, s] = w2[c, s]
       b2_ref : (Cp, 1)
       f_ref  : (1, C, 1)    excitation for this batch element
       acc_ref: (Cp, 128)    f32 pooled-sum accumulator (column 0 is live)."""
    t = pl.program_id(1)

    @pl.when(t == 0)
    def _():
        acc_ref[...] = jnp.zeros_like(acc_ref)

    xt = x_ref[0]                                           # (C, thw)
    if needs_mask:
        # Tail mask: columns past the true spatial extent contribute 0.
        col = jax.lax.broadcasted_iota(jnp.int32, xt.shape, 1)
        valid = hw - t * thw
        xt = jnp.where(col < valid, xt, 0.0)

    # Partial spatial sum of this tile: (C, 1), channels on sublanes.
    acc_ref[:c, 0:1] += jnp.sum(xt, axis=-1, keepdims=True)

    @pl.when(t == pl.num_programs(1) - 1)
    def _():
        pooled_t = acc_ref[...] * inv_hw                    # (Cp, 128)
        # fc1 + SiLU, computed transposed:  h^T = W1 @ pooled^T
        h = jnp.dot(w1_ref[...], pooled_t,
                    preferred_element_type=jnp.float32) + b1_ref[...]
        h = h * jax.nn.sigmoid(h)                           # (Sp, 128)
        # fc2 + sigmoid:  g^T = W2 @ h^T
        g = jnp.dot(w2_ref[...], h,
                    preferred_element_type=jnp.float32) + b2_ref[...]
        g = jax.nn.sigmoid(g)                               # (Cp, 128)
        f_ref[0] = g[:c, 0:1].astype(f_ref.dtype)           # (C, 1)


# ----------------------------------------------------------------------------
# Kernel 2: broadcast scale  y = x * f  (mem-bound, lane-dense output).
# ----------------------------------------------------------------------------
def _se_scale_kernel(x_ref, f_ref, o_ref, *, b_r):
    """x_ref: (b_r, t_l) tile; f_ref: (Rp, 1) whole excitation (VMEM-resident);
       o_ref: (b_r, t_l)."""
    i = pl.program_id(0)
    start = pl.multiple_of(i * b_r, 8)
    f = f_ref[pl.ds(start, b_r), :]                         # (b_r, 1)
    o_ref[...] = x_ref[...] * f                             # lane broadcast


# ----------------------------------------------------------------------------
# Wrapper
# ----------------------------------------------------------------------------
def se_block(x, fc1_w, fc1_b, fc2_w, fc2_b):
    """SeBlock forward.  x: (N, C, H, W) float32; PyTorch 1x1 Conv2d params."""
    N, C, H, W = x.shape
    sq = fc1_w.shape[0]
    HW = H * W
    R = N * C

    Cp = _round_up(C, 128)
    Sp = _round_up(sq, 128)

    # Tiny padded copies of the FC parameters only (never the activation).
    w1t = jnp.zeros((Sp, Cp), jnp.float32).at[:sq, :C].set(
        fc1_w[:, :, 0, 0].astype(jnp.float32))
    b1c = jnp.zeros((Sp, 1), jnp.float32).at[:sq, 0].set(fc1_b.astype(jnp.float32))
    w2t = jnp.zeros((Cp, Sp), jnp.float32).at[:C, :sq].set(
        fc2_w[:, :, 0, 0].astype(jnp.float32))
    b2c = jnp.zeros((Cp, 1), jnp.float32).at[:C, 0].set(fc2_b.astype(jnp.float32))

    x3 = x.reshape(N, C, HW)

    # ---- kernel 1: pooled reduction + both FCs ------------------------------
    budget1 = 8 << 20                               # ~8 MiB f32 per x block
    thw = min(_round_up(HW, 128),
              max(128, (budget1 // (4 * C)) // 128 * 128))
    n_t = _cdiv(HW, thw)
    needs_mask = (HW % thw) != 0

    blk1_bytes = 4 * C * thw
    w_bytes = 4 * 2 * (Sp * Cp + Sp + Cp * Sp + Cp)         # double-buffered
    acc_bytes = 4 * Cp * 128
    vmem1 = int(min(max(2 * blk1_bytes + w_bytes + acc_bytes + (4 << 20),
                        32 << 20), 48 << 20))

    # NOTE: the only parallel axis here is N; for batch-1 inference on v7x one
    # TensorCore idles during this (1/3-of-traffic) pass. A channel-parallel
    # restructure (FCs recomputed in kernel 2) would recover that if needed.
    f3 = pl.pallas_call(
        functools.partial(_se_squeeze_excite_kernel, c=C, hw=HW, thw=thw,
                          inv_hw=1.0 / HW, needs_mask=needs_mask),
        out_shape=jax.ShapeDtypeStruct((N, C, 1), jnp.float32),
        grid_spec=pltpu.PrefetchScalarGridSpec(
            num_scalar_prefetch=0,
            grid=(N, n_t),
            in_specs=[
                pl.BlockSpec((1, C, thw), lambda b, t: (b, 0, t)),
                pl.BlockSpec((Sp, Cp), lambda b, t: (0, 0)),
                pl.BlockSpec((Sp, 1), lambda b, t: (0, 0)),
                pl.BlockSpec((Cp, Sp), lambda b, t: (0, 0)),
                pl.BlockSpec((Cp, 1), lambda b, t: (0, 0)),
            ],
            out_specs=pl.BlockSpec((1, C, 1), lambda b, t: (b, 0, 0)),
            scratch_shapes=[pltpu.VMEM((Cp, 128), jnp.float32)],
        ),
        compiler_params=pltpu.CompilerParams(
            dimension_semantics=("parallel", "arbitrary"),
            vmem_limit_bytes=vmem1),
    )(x3, w1t, b1c, w2t, b2c)

    # ---- kernel 2: y = x * f (broadcast over spatial lanes) -----------------
    budget2 = 8 << 20                               # ~8 MiB f32 per x block
    t_l = min(_round_up(HW, 128), 8192)
    b_r = min(max(8, min(512, (budget2 // (4 * t_l)) // 8 * 8)),
              _round_up(R, 8))

    # Keep the (fully parallel) step count even and >= 4 when it is small so
    # both v7x TensorCores stay balanced; never break (8,128) alignment.
    while True:
        steps = _cdiv(R, b_r) * _cdiv(HW, t_l)
        if steps >= 8 or (steps >= 4 and steps % 2 == 0):
            break
        if t_l % 256 == 0:
            t_l //= 2
        elif b_r % 16 == 0:
            b_r //= 2
        else:
            break

    g_r = _cdiv(R, b_r)
    g_l = _cdiv(HW, t_l)
    Rp = g_r * b_r                                  # padded row count for f

    x2 = x3.reshape(R, HW)
    f2 = f3.reshape(R, 1)
    if Rp != R:                                     # pad the tiny f vector only
        f2 = jnp.zeros((Rp, 1), jnp.float32).at[:R, :].set(f2)

    blk2_bytes = 4 * b_r * t_l
    f_bytes = 4 * 128 * Rp                          # lane-padded VMEM footprint
    vmem2 = int(min(max(4 * blk2_bytes + 2 * f_bytes + (4 << 20),
                        32 << 20), 48 << 20))

    y2 = pl.pallas_call(
        functools.partial(_se_scale_kernel, b_r=b_r),
        out_shape=jax.ShapeDtypeStruct((R, HW), jnp.float32),
        grid_spec=pltpu.PrefetchScalarGridSpec(
            num_scalar_prefetch=0,
            grid=(g_r, g_l),
            in_specs=[
                pl.BlockSpec((b_r, t_l), lambda i, j: (i, j)),
                # whole-array, constant-index: one DMA, stays VMEM-resident
                pl.BlockSpec((Rp, 1), lambda i, j: (0, 0)),
            ],
            out_specs=pl.BlockSpec((b_r, t_l), lambda i, j: (i, j)),
        ),
        compiler_params=pltpu.CompilerParams(
            dimension_semantics=("parallel", "parallel"),
            vmem_limit_bytes=vmem2),
    )(x2, f2)

    return y2.reshape(N, C, H, W)


# ----------------------------------------------------------------------------
# Pure-JAX reference (mirrors the PyTorch SeBlock forward).
# ----------------------------------------------------------------------------
def se_block_ref(x, fc1_w, fc1_b, fc2_w, fc2_b):
    pooled = jnp.mean(x, axis=(2, 3))                            # (N, C)
    h = pooled @ fc1_w[:, :, 0, 0].T + fc1_b                     # (N, sq)
    h = h * jax.nn.sigmoid(h)                                    # SiLU
    g = h @ fc2_w[:, :, 0, 0].T + fc2_b                          # (N, C)
    g = jax.nn.sigmoid(g)
    return x * g[:, :, None, None]


if __name__ == "__main__":
    key = jax.random.PRNGKey(0)
    kx, kw1, kb1, kw2, kb2 = jax.random.split(key, 5)
    N, C, H, W = 2, 8, 16, 16
    SQ = 2                                            # squeeze_channels

    x = jax.random.normal(kx, (N, C, H, W), jnp.float32)
    fc1_w = 0.3 * jax.random.normal(kw1, (SQ, C, 1, 1), jnp.float32)
    fc1_b = 0.1 * jax.random.normal(kb1, (SQ,), jnp.float32)
    fc2_w = 0.3 * jax.random.normal(kw2, (C, SQ, 1, 1), jnp.float32)
    fc2_b = 0.1 * jax.random.normal(kb2, (C,), jnp.float32)

    fwd = jax.jit(se_block)
    out = jax.block_until_ready(fwd(x, fc1_w, fc1_b, fc2_w, fc2_b))

    ref = se_block_ref(x, fc1_w, fc1_b, fc2_w, fc2_b)
    assert out.shape == (N, C, H, W), out.shape
    assert bool(jnp.all(jnp.isfinite(out)))
    max_err = float(jnp.max(jnp.abs(out - ref)))
    assert max_err < 2e-3, max_err
    print("KERNEL_OK")
</pallas_src>

<mosaic_0001>
module attributes {stable_mosaic.version = 11 : i64} {
  func.func @_se_scale_kernel(%arg0: i32, %arg1: i32, %arg2: memref<8x128xf32, #tpu.memory_space<vmem>>, %arg3: memref<16x1xf32, #tpu.memory_space<vmem>>, %arg4: memref<8x128xf32, #tpu.memory_space<vmem>>) attributes {dimension_semantics = [#tpu.dimension_semantics<parallel>, #tpu.dimension_semantics<parallel>], iteration_bounds = array<i64: 2, 2>, scalar_prefetch = 0 : i64, scratch_operands = 0 : i64, tpu.core_type = #tpu.core_type<tc>, window_params = [{transform_indices = @transform_0, window_bounds = array<i64: 8, 128>}, {pipeline_mode = #tpu.pipeline_mode<synchronous>, transform_indices = @transform_1, window_bounds = array<i64: 16, 1>}, {transform_indices = @transform_2, window_bounds = array<i64: 8, 128>}]} {
    %c8_i32 = arith.constant 8 : i32
    %0 = arith.muli %arg0, %c8_i32 : i32
    %1 = tpu.assume_multiple %0, 8 : i32
    %2 = arith.index_cast %1 : i32 to index
    %c0 = arith.constant 0 : index
    %3 = vector.load %arg3[%2, %c0] : memref<16x1xf32, #tpu.memory_space<vmem>>, vector<8x1xf32>
    %c0_0 = arith.constant 0 : index
    %c0_1 = arith.constant 0 : index
    %4 = vector.load %arg2[%c0_0, %c0_1] : memref<8x128xf32, #tpu.memory_space<vmem>>, vector<8x128xf32>
    %5 = vector.broadcast %3 : vector<8x1xf32> to vector<8x128xf32>
    %6 = arith.mulf %4, %5 : vector<8x128xf32>
    %c0_2 = arith.constant 0 : index
    %c0_3 = arith.constant 0 : index
    %7 = vector.load %arg4[%c0_2, %c0_3] : memref<8x128xf32, #tpu.memory_space<vmem>>, vector<8x128xf32>
    tpu.vector_store %arg4[%c0_2, %c0_3], %6 {strides = array<i32>} : memref<8x128xf32, #tpu.memory_space<vmem>>, vector<8x128xf32>,
    return
  }
  func.func @transform_0(%arg0: i32, %arg1: i32) -> (i32, i32) {
    %c0_i32 = arith.constant 0 : i32
    return %arg0, %arg1 : i32, i32
  }
  func.func @transform_1(%arg0: i32, %arg1: i32) -> (i32, i32) {
    %c0_i32 = arith.constant 0 : i32
    %c0_i32_0 = arith.constant 0 : i32
    %c0_i32_1 = arith.constant 0 : i32
    return %c0_i32, %c0_i32_0 : i32, i32
  }
  func.func @transform_2(%arg0: i32, %arg1: i32) -> (i32, i32) {
    %c0_i32 = arith.constant 0 : i32
    return %arg0, %arg1 : i32, i32
  }
}

module attributes {stable_mosaic.version = 11 : i64} {
  func.func @_se_squeeze_excite_kernel(%arg0: i32, %arg1: i32, %arg2: memref<1x8x256xf32, #tpu.memory_space<vmem>>, %arg3: memref<128x128xf32, #tpu.memory_space<vmem>>, %arg4: memref<128x1xf32, #tpu.memory_space<vmem>>, %arg5: memref<128x128xf32, #tpu.memory_space<vmem>>, %arg6: memref<128x1xf32, #tpu.memory_space<vmem>>, %arg7: memref<1x8x1xf32, #tpu.memory_space<vmem>>, %arg8: memref<128x128xf32, #tpu.memory_space<vmem>>) attributes {dimension_semantics = [#tpu.dimension_semantics<parallel>, #tpu.dimension_semantics<arbitrary>], iteration_bounds = array<i64: 2, 1>, scalar_prefetch = 0 : i64, scratch_operands = 1 : i64, tpu.core_type = #tpu.core_type<tc>, window_params = [{transform_indices = @transform_0, window_bounds = array<i64: 1, 8, 256>}, {pipeline_mode = #tpu.pipeline_mode<synchronous>, transform_indices = @transform_1, window_bounds = array<i64: 128, 128>}, {pipeline_mode = #tpu.pipeline_mode<synchronous>, transform_indices = @transform_2, window_bounds = array<i64: 128, 1>}, {pipeline_mode = #tpu.pipeline_mode<synchronous>, transform_indices = @transform_3, window_bounds = array<i64: 128, 128>}, {pipeline_mode = #tpu.pipeline_mode<synchronous>, transform_indices = @transform_4, window_bounds = array<i64: 128, 1>}, {transform_indices = @transform_5, window_bounds = array<i64: 1, 8, 1>}]} {
    %c0_i32 = arith.constant 0 : i32
    %0 = arith.cmpi eq, %arg1, %c0_i32 : i32
    %1 = arith.extui %0 : i1 to i32
    %c0_i32_0 = arith.constant 0 : i32
    %2 = arith.cmpi ne, %1, %c0_i32_0 : i32
    scf.if %2 {
      %cst_9 = arith.constant 0.000000e+00 : f32
      %13 = vector.broadcast %cst_9 : f32 to vector<128x128xf32>
      %c0_10 = arith.constant 0 : index
      %c0_11 = arith.constant 0 : index
      %14 = vector.load %arg8[%c0_10, %c0_11] : memref<128x128xf32, #tpu.memory_space<vmem>>, vector<128x128xf32>
      tpu.vector_store %arg8[%c0_10, %c0_11], %13 {strides = array<i32>} : memref<128x128xf32, #tpu.memory_space<vmem>>, vector<128x128xf32>,
    } else {
    }
    %c0 = arith.constant 0 : index
    %c0_1 = arith.constant 0 : index
    %c0_2 = arith.constant 0 : index
    %3 = vector.load %arg2[%c0, %c0_1, %c0_2] : memref<1x8x256xf32, #tpu.memory_space<vmem>>, vector<1x8x256xf32>
    %4 = vector.shape_cast %3 : vector<1x8x256xf32> to vector<8x256xf32>
    %c0_3 = arith.constant 0 : index
    %c0_4 = arith.constant 0 : index
    %5 = vector.load %arg8[%c0_3, %c0_4] : memref<128x128xf32, #tpu.memory_space<vmem>>, vector<8x1xf32>
    %cst = arith.constant dense<0.000000e+00> : vector<8xf32>
    %6 = vector.multi_reduction <add>, %4, %cst [1] : vector<8x256xf32> to vector<8xf32>
    %7 = vector.shape_cast %6 : vector<8xf32> to vector<8x1xf32>
    %8 = arith.addf %5, %7 : vector<8x1xf32>
    %c0_5 = arith.constant 0 : index
    %c0_6 = arith.constant 0 : index
    %9 = vector.load %arg8[%c0_5, %c0_6] : memref<128x128xf32, #tpu.memory_space<vmem>>, vector<8x1xf32>
    tpu.vector_store %arg8[%c0_5, %c0_6], %8 {strides = array<i32>} : memref<128x128xf32, #tpu.memory_space<vmem>>, vector<8x1xf32>,
    %c0_i32_7 = arith.constant 0 : i32
    %10 = arith.cmpi eq, %arg1, %c0_i32_7 : i32
    %11 = arith.extui %10 : i1 to i32
    %c0_i32_8 = arith.constant 0 : i32
    %12 = arith.cmpi ne, %11, %c0_i32_8 : i32
    scf.if %12 {
      %c0_9 = arith.constant 0 : index
      %c0_10 = arith.constant 0 : index
      %13 = vector.load %arg8[%c0_9, %c0_10] : memref<128x128xf32, #tpu.memory_space<vmem>>, vector<128x128xf32>
      %cst_11 = arith.constant 3.906250e-03 : f32
      %14 = vector.broadcast %cst_11 : f32 to vector<128x128xf32>
      %15 = arith.mulf %13, %14 : vector<128x128xf32>
      %c0_12 = arith.constant 0 : index
      %c0_13 = arith.constant 0 : index
      %16 = vector.load %arg3[%c0_12, %c0_13] : memref<128x128xf32, #tpu.memory_space<vmem>>, vector<128x128xf32>
      %cst_14 = arith.constant dense<0.000000e+00> : vector<128x128xf32>
      %17 = tpu.matmul %16, %15, %cst_14 {dimension_numbers = #tpu.dot_dimension_numbers<[1], [0], [0], [1], [0, 0, 1, 1], [], []>} : vector<128x128xf32>, vector<128x128xf32>, vector<128x128xf32> -> vector<128x128xf32>
      %c0_15 = arith.constant 0 : index
      %c0_16 = arith.constant 0 : index
      %18 = vector.load %arg4[%c0_15, %c0_16] : memref<128x1xf32, #tpu.memory_space<vmem>>, vector<128x1xf32>
      %19 = vector.broadcast %18 : vector<128x1xf32> to vector<128x128xf32>
      %20 = arith.addf %17, %19 : vector<128x128xf32>
      %21 = arith.negf %20 : vector<128x128xf32>
      %22 = math.exp %21 : vector<128x128xf32>
      %cst_17 = arith.constant 1.000000e+00 : f32
      %23 = vector.broadcast %cst_17 : f32 to vector<128x128xf32>
      %24 = arith.addf %23, %22 : vector<128x128xf32>
      %25 = arith.divf %23, %24 : vector<128x128xf32>
      %26 = arith.mulf %20, %25 : vector<128x128xf32>
      %c0_18 = arith.constant 0 : index
      %c0_19 = arith.constant 0 : index
      %27 = vector.load %arg5[%c0_18, %c0_19] : memref<128x128xf32, #tpu.memory_space<vmem>>, vector<128x128xf32>
      %cst_20 = arith.constant dense<0.000000e+00> : vector<128x128xf32>
      %28 = tpu.matmul %27, %26, %cst_20 {dimension_numbers = #tpu.dot_dimension_numbers<[1], [0], [0], [1], [0, 0, 1, 1], [], []>} : vector<128x128xf32>, vector<128x128xf32>, vector<128x128xf32> -> vector<128x128xf32>
      %c0_21 = arith.constant 0 : index
      %c0_22 = arith.constant 0 : index
      %29 = vector.load %arg6[%c0_21, %c0_22] : memref<128x1xf32, #tpu.memory_space<vmem>>, vector<128x1xf32>
      %30 = vector.broadcast %29 : vector<128x1xf32> to vector<128x128xf32>
      %31 = arith.addf %28, %30 : vector<128x128xf32>
      %32 = arith.negf %31 : vector<128x128xf32>
      %33 = math.exp %32 : vector<128x128xf32>
      %cst_23 = arith.constant 1.000000e+00 : f32
      %34 = vector.broadcast %cst_23 : f32 to vector<128x128xf32>
      %35 = arith.addf %34, %33 : vector<128x128xf32>
      %36 = arith.divf %34, %35 : vector<128x128xf32>
      %37 = vector.extract_strided_slice %36 {offsets = [0, 0], sizes = [8, 1], strides = [1, 1]} : vector<128x128xf32> to vector<8x1xf32>
      %c0_24 = arith.constant 0 : index
      %c0_25 = arith.constant 0 : index
      %c0_26 = arith.constant 0 : index
      %38 = vector.load %arg7[%c0_24, %c0_25, %c0_26] : memref<1x8x1xf32, #tpu.memory_space<vmem>>, vector<1x8x1xf32>
      %39 = vector.shape_cast %38 : vector<1x8x1xf32> to vector<8x1xf32>
      %40 = vector.shape_cast %37 : vector<8x1xf32> to vector<1x8x1xf32>
      tpu.vector_store %arg7[%c0_24, %c0_25, %c0_26], %40 {strides = array<i32>} : memref<1x8x1xf32, #tpu.memory_space<vmem>>, vector<1x8x1xf32>,
    } else {
    }
    return
  }
  func.func @transform_0(%arg0: i32, %arg1: i32) -> (i32, i32, i32) {
    %c0_i32 = arith.constant 0 : i32
    %c0_i32_0 = arith.constant 0 : i32
    return %arg0, %c0_i32, %arg1 : i32, i32, i32
  }
  func.func @transform_1(%arg0: i32, %arg1: i32) -> (i32, i32) {
    %c0_i32 = arith.constant 0 : i32
    %c0_i32_0 = arith.constant 0 : i32
    %c0_i32_1 = arith.constant 0 : i32
    return %c0_i32, %c0_i32_0 : i32, i32
  }
  func.func @transform_2(%arg0: i32, %arg1: i32) -> (i32, i32) {
    %c0_i32 = arith.constant 0 : i32
    %c0_i32_0 = arith.constant 0 : i32
    %c0_i32_1 = arith.constant 0 : i32
    return %c0_i32, %c0_i32_0 : i32, i32
  }
  func.func @transform_3(%arg0: i32, %arg1: i32) -> (i32, i32) {
    %c0_i32 = arith.constant 0 : i32
    %c0_i32_0 = arith.constant 0 : i32
    %c0_i32_1 = arith.constant 0 : i32
    return %c0_i32, %c0_i32_0 : i32, i32
  }
  func.func @transform_4(%arg0: i32, %arg1: i32) -> (i32, i32) {
    %c0_i32 = arith.constant 0 : i32
    %c0_i32_0 = arith.constant 0 : i32
    %c0_i32_1 = arith.constant 0 : i32
    return %c0_i32, %c0_i32_0 : i32, i32
  }
  func.func @transform_5(%arg0: i32, %arg1: i32) -> (i32, i32, i32) {
    %c0_i32 = arith.constant 0 : i32
    %c0_i32_0 = arith.constant 0 : i32
    %c0_i32_1 = arith.constant 0 : i32
    return %arg0, %c0_i32, %c0_i32_0 : i32, i32, i32
  }
}

</mosaic_0001>

<llo_original>
// kernel: se_block.3
$region0: #{se_block.3}
  #allocation0 [shape = 'u32[]', space=smem, size = 0x4, offset = 0x4, fixed_abs, tag = 'smem constant byte address 0x4 - core index']
  #allocation1 [shape = 'u32[144,128]{1,0:T(1,128)}', space=vmem, size = 0x12000, scoped, tag = 'internal scratch']
  %s0 = inlined_call_operand.vmem [shape: f32[16,256], index: 0, kind: input, shape index: {}]
  %s1 = inlined_call_operand.vmem [shape: f32[16,1], index: 1, kind: input, shape index: {}]
  %s2 = inlined_call_operand.vmem [shape: f32[16,256], index: 2, kind: output, shape index: {}]
  %s3 = sld [smem:[#allocation0]]
  $region41: #{se_block.3} parent=0
    _
  %s5 = ssub.s32 1, %s3
  %s6 = scalar_select 0, %s5, %s3
  loop: start=0, step=1, limit=6
  $region2: #{se_block.3} parent=0 // loop_pre_header
    _
  $region3: #{se_block.3} parent=0 // loop_header
    %s8 = sphi 0, %s12
    %p9 = scmp.ge.s32.totalorder %s8, 6
    %s15 = sphi 0, %s27
    %s16 = sphi 0, %s23
    %s17 = sphi 0, %s15
    %s18 = sphi 0, %s16
    %s19 = sphi 0, %s17
    %s20 = sphi 0, %s18
    %s32 = sphi 0, %s34
    %s35 = sphi 0, %s32
    %s36 = sphi 0, %s35
    %s52 = sphi 0, %s36
    %s56 = sphi 0, %s56
    %s58 = sphi 0, %s56
    %s59 = sphi 0, %s58
    %s73 = sphi 0, %s59
    %s81 = sphi 0, %s83
    %s84 = sphi 0, %s81
    %s85 = sphi 0, %s84
    %s101 = sphi 0, %s85
  $region4: #{se_block.3} parent=0 // loop_header_branch
    %11 = sbr.rel (%p9) target = $region8
  $region5: #{se_block.3} parent=0 // loop_body
    %s13 = ssub.s32 %s8, 1
    %s14 = ssub.s32 %s8, 2
    %s21 = sadd.s32 1, %s16
    %p22 = scmp.ge.s32.totalorder %s21, 2
    %s23 = scalar_select %p22, 0, %s21
    %s24 = sadd.s32 1, %s15
    %s25 = scalar_select %p22, %s24, %s15
    %p26 = scmp.ge.s32.totalorder %s25, 2
    %s27 = scalar_select %p26, 0, %s25
    %s28 = ssub.s32 %s15, %s27
    %s29 = ssub.s32 %s16, %s23
    %s30 = sor.u32 %s28, %s29
    %p31 = scmp.eq.s32.totalorder %s30, 0
    %s33 = sadd.s32 %s32, 1
    %s34 = scalar_select %p31, %s32, %s33
    %p37 = pneg %p31
    %p38 = scmp.eq.s32.totalorder %s8, 3
    %p39 = por %p37, %p38
    %p40 = scmp.ne.s32.totalorder %s32, %s35
    %p41 = scmp.eq.s32.totalorder %s8, 0
    %p42 = por %p40, %p41
    %p43 = scmp.ne.s32.totalorder %s32, %s35
    %p44 = scmp.eq.s32.totalorder %s13, 3
    %p45 = por %p43, %p44
    %p46 = scmp.ne.s32.totalorder %s35, %s36
    %p47 = scmp.eq.s32.totalorder %s13, 0
    %p48 = por %p46, %p47
    %p49 = scmp.ne.s32.totalorder %s35, %s36
    %p50 = scmp.eq.s32.totalorder %s14, 3
    %p51 = por %p49, %p50
    %p53 = scmp.ne.s32.totalorder %s36, %s52
    %p54 = scmp.eq.s32.totalorder %s14, 0
    %p55 = por %p53, %p54
    %s57 = sadd.s32 %s56, 1
    %p60 = scmp.eq.s32.totalorder %s8, 3
    %p61 = scmp.ne.s32.totalorder %s56, %s58
    %p62 = scmp.eq.s32.totalorder %s8, 0
    %p63 = por %p61, %p62
    %p64 = scmp.ne.s32.totalorder %s56, %s58
    %p65 = scmp.eq.s32.totalorder %s13, 3
    %p66 = por %p64, %p65
    %p67 = scmp.ne.s32.totalorder %s58, %s59
    %p68 = scmp.eq.s32.totalorder %s13, 0
    %p69 = por %p67, %p68
    %p70 = scmp.ne.s32.totalorder %s58, %s59
    %p71 = scmp.eq.s32.totalorder %s14, 3
    %p72 = por %p70, %p71
    %p74 = scmp.ne.s32.totalorder %s59, %s73
    %p75 = scmp.eq.s32.totalorder %s14, 0
    %p76 = por %p74, %p75
    %s77 = ssub.s32 %s15, %s27
    %s78 = ssub.s32 %s16, %s23
    %s79 = sor.u32 %s77, %s78
    %p80 = scmp.eq.s32.totalorder %s79, 0
    %s82 = sadd.s32 %s81, 1
    %s83 = scalar_select %p80, %s81, %s82
    %p86 = pneg %p80
    %p87 = scmp.eq.s32.totalorder %s8, 3
    %p88 = por %p86, %p87
    %p89 = scmp.ne.s32.totalorder %s81, %s84
    %p90 = scmp.eq.s32.totalorder %s8, 0
    %p91 = por %p89, %p90
    %p92 = scmp.ne.s32.totalorder %s81, %s84
    %p93 = scmp.eq.s32.totalorder %s13, 3
    %p94 = por %p92, %p93
    %p95 = scmp.ne.s32.totalorder %s84, %s85
    %p96 = scmp.eq.s32.totalorder %s13, 0
    %p97 = por %p95, %p96
    %p98 = scmp.ne.s32.totalorder %s84, %s85
    %p99 = scmp.eq.s32.totalorder %s14, 3
    %p100 = por %p98, %p99
    %p102 = scmp.ne.s32.totalorder %s85, %s101
    %p103 = scmp.eq.s32.totalorder %s14, 0
    %p104 = por %p102, %p103
    %p105 = scmp.le.s32.totalorder 1, %s8
    %p106 = scmp.lt.s32.totalorder %s8, 5
    %p107 = pnand %p105, %p106
    %p108 = pneg %p107
    // Predicated region
    $region9: #{se_block.3} parent=5 // pred_check
      _
    $region10: #{se_block.3} parent=5 // pred_check_branch
      %110 = sbr.rel (%p107) target = $region12
    $region11: #{se_block.3} parent=5 // pred_region
      %s111 = ssub.s32 %s8, 1
      // Predicated region
      $region13: #{se_block.3} parent=11 // pred_check
        %p112 = pneg %p69
      $region14: #{se_block.3} parent=11 // pred_check_branch
        %114 = sbr.rel (%p112) target = $region16
      $region15: #{se_block.3} parent=11 // pred_region
        _
      $region16: #{se_block.3} parent=11 // pred_fallthru
        _
    $region12: #{se_block.3} parent=5 // pred_fallthru
      _
    %p115 = scmp.lt.s32.totalorder %s8, 4
    // Predicated region
    $region17: #{se_block.3} parent=5 // pred_check
      %p116 = pneg %p115
    $region18: #{se_block.3} parent=5 // pred_check_branch
      %118 = sbr.rel (%p116) target = $region20
    $region19: #{se_block.3} parent=5 // pred_region
      // Predicated region
      $region21: #{se_block.3} parent=19 // pred_check
        %p119 = pneg %p42
      $region22: #{se_block.3} parent=19 // pred_check_branch
        %121 = sbr.rel (%p119) target = $region24
      $region23: #{se_block.3} parent=19 // pred_region
        %p122 = scmp.lt.s32.totalorder %s15, 1
        %s123 = scalar_select %p122, %s15, 1
        %p124 = scmp.lt.s32.totalorder %s16, 1
        %s125 = scalar_select %p124, %s16, 1
        %s126 = smul.addr %s123, 2
        %s127 = sadd.s32 %s125, %s126
        %s128 = smul.addr %s127, 8
        %s129 = scalar_lea.vmem %s0, %s128
      $region24: #{se_block.3} parent=19 // pred_fallthru
        _
    $region20: #{se_block.3} parent=5 // pred_fallthru
      _
    %p130 = scmp.le.s32.totalorder 1, %s8
    %p131 = scmp.lt.s32.totalorder %s8, 5
    %p132 = pnand %p130, %p131
    %p133 = pneg %p132
    // Predicated region
    $region25: #{se_block.3} parent=5 // pred_check
      _
    $region26: #{se_block.3} parent=5 // pred_check_branch
      %135 = sbr.rel (%p132) target = $region28
    $region27: #{se_block.3} parent=5 // pred_region
      %s136 = ssub.s32 %s8, 1
      %p137 = scmp.lt.s32.totalorder %s17, 1
      %s138 = scalar_select %p137, %s17, 1
      %p139 = scmp.lt.s32.totalorder %s18, 1
      %s140 = scalar_select %p139, %s18, 1
      %s141 = smul.addr %s138, 2
      %s142 = sadd.s32 %s140, %s141
      %s143 = smul.addr %s142, 8
      %s144 = scalar_lea.vmem %s0, %s143
      %p145 = pneg %p48
      %p146 = pneg %p45
      %p147 = pneg %p69
      %p148 = pneg %p66
      %p149 = pneg %p97
      %p150 = pneg %p94
      %p151 = scmp.lt.s32.totalorder %s17, 1
      %s152 = scalar_select %p151, %s17, 1
      %p153 = scmp.lt.s32.totalorder %s18, 1
      %s154 = scalar_select %p153, %s18, 1
      %s155 = smul.addr %s152, 2
      %s156 = sadd.s32 %s154, %s155
      %s157 = smul.addr %s156, 8
      %s158 = scalar_lea.vmem %s2, %s157
      %p159 = scmp.lt.s32.totalorder %s17, 1
      %s160 = scalar_select %p159, %s17, 1
      %p161 = scmp.lt.s32.totalorder %s18, 1
      %s162 = scalar_select %p161, %s18, 1
      %s163 = smul.addr %s160, 2
      %s164 = sadd.s32 %s162, %s163
      %s165 = smul.addr %s164, 8
      %s166 = scalar_lea.vmem %s0, %s165
      %p167 = scmp.lt.s32.totalorder %s17, 1
      %s168 = scalar_select %p167, %s17, 1
      %p169 = scmp.lt.s32.totalorder %s18, 1
      %s170 = scalar_select %p169, %s18, 1
      %s171 = smul.addr %s168, 2
      %s172 = sadd.s32 %s170, %s171
      %s173 = smul.addr %s172, 8
      %s174 = scalar_lea.vmem %s2, %s173
      %s175 = smul.u32 %s17, 8
      %s176 = scalar_lea.vmem %s1, %s175
      %v177 = vld [vmem:[%s176] sm:$0xff]
      %v178 = vld [vmem:[%s166] sm:$0xff]
      %180 = vset.pattern.permute.xlu0 0
      %181 = vperm.xlu0 %180, %v177
      %v182 = vpop.permute.xlu0 %181
      %v184 = vmul.f32 %v178, %v182
      %185 = vst [vmem:[%s174] sm:$0xff] %v184
      %p186 = scmp.lt.s32.totalorder %s17, 1
      %s187 = scalar_select %p186, %s17, 1
      %p188 = scmp.lt.s32.totalorder %s18, 1
      %s189 = scalar_select %p188, %s18, 1
      %s190 = smul.addr %s187, 2
      %s191 = sadd.s32 %s189, %s190
      %s192 = smul.addr %s191, 8
      %s193 = scalar_lea.vmem %s2, %s192
      // Predicated region
      $region29: #{se_block.3} parent=27 // pred_check
        %p194 = pneg %p94
      $region30: #{se_block.3} parent=27 // pred_check_branch
        %196 = sbr.rel (%p194) target = $region32
      $region31: #{se_block.3} parent=27 // pred_region
        _
      $region32: #{se_block.3} parent=27 // pred_fallthru
        _
    $region28: #{se_block.3} parent=5 // pred_fallthru
      _
    %p197 = scmp.le.s32.totalorder 2, %s8
    // Predicated region
    $region33: #{se_block.3} parent=5 // pred_check
      %p198 = pneg %p197
    $region34: #{se_block.3} parent=5 // pred_check_branch
      %200 = sbr.rel (%p198) target = $region36
    $region35: #{se_block.3} parent=5 // pred_region
      %s201 = ssub.s32 %s8, 2
      // Predicated region
      $region37: #{se_block.3} parent=35 // pred_check
        %p202 = pneg %p100
      $region38: #{se_block.3} parent=35 // pred_check_branch
        %204 = sbr.rel (%p202) target = $region40
      $region39: #{se_block.3} parent=35 // pred_region
        %p205 = scmp.lt.s32.totalorder %s19, 1
        %s206 = scalar_select %p205, %s19, 1
        %p207 = scmp.lt.s32.totalorder %s20, 1
        %s208 = scalar_select %p207, %s20, 1
        %s209 = smul.addr %s206, 2
        %s210 = sadd.s32 %s208, %s209
        %s211 = smul.addr %s210, 8
        %s212 = scalar_lea.vmem %s2, %s211
      $region40: #{se_block.3} parent=35 // pred_fallthru
        _
    $region36: #{se_block.3} parent=5 // pred_fallthru
      _
  $region6: #{se_block.3} parent=0 // loop_footer
    %s12 = sadd.s32 1, %s8
  $region7: #{se_block.3} parent=0 // loop_footer_branch
    %7 = sbr.rel target = $region3
  $region8: #{se_block.3} parent=0 // loop_exit
    _

// kernel: se_block.2
$region0: #{se_block.2}
  #allocation0 [shape = 'u32[]', space=smem, size = 0x4, offset = 0x4, fixed_abs, tag = 'smem constant byte address 0x4 - core index']
  #allocation1 [shape = 'u32[144,128]{1,0:T(1,128)}', space=vmem, size = 0x12000, scoped, tag = 'internal scratch']
  #allocation2 [shape = 'f32[128,128]{1,0:T(8,128)}', space=vmem, size = 0x10000, scoped, tag = 'scratch operand']
  %s0 = inlined_call_operand.vmem [shape: f32[2,8,256], index: 0, kind: input, shape index: {}]
  %s1 = inlined_call_operand.vmem [shape: f32[128,128], index: 1, kind: input, shape index: {}]
  %s2 = inlined_call_operand.vmem [shape: f32[128,1], index: 2, kind: input, shape index: {}]
  %s3 = inlined_call_operand.vmem [shape: f32[128,128], index: 3, kind: input, shape index: {}]
  %s4 = inlined_call_operand.vmem [shape: f32[128,1], index: 4, kind: input, shape index: {}]
  %s5 = inlined_call_operand.vmem [shape: f32[2,8,1], index: 5, kind: output, shape index: {}]
  %s6 = sld [smem:[#allocation0]]
  $region61: #{se_block.2} parent=0
    _
  %s8 = ssub.s32 1, %s6
  %s9 = scalar_select 0, %s8, %s6
  loop: start=0, step=1, limit=4
  $region2: #{se_block.2} parent=0 // loop_pre_header
    _
  $region3: #{se_block.2} parent=0 // loop_header
    %s11 = sphi 0, %s15
    %p12 = scmp.ge.s32.totalorder %s11, 4
    %s18 = sphi 0, %s30
    %s19 = sphi 0, %s26
    %s20 = sphi 0, %s18
    %s21 = sphi 0, %s19
    %s22 = sphi 0, %s20
    %s23 = sphi 0, %s21
    %s35 = sphi 0, %s37
    %s38 = sphi 0, %s35
    %s39 = sphi 0, %s38
    %s55 = sphi 0, %s39
    %s59 = sphi 0, %s59
    %s61 = sphi 0, %s59
    %s62 = sphi 0, %s61
    %s76 = sphi 0, %s62
    %s80 = sphi 0, %s80
    %s82 = sphi 0, %s80
    %s83 = sphi 0, %s82
    %s97 = sphi 0, %s83
    %s101 = sphi 0, %s101
    %s103 = sphi 0, %s101
    %s104 = sphi 0, %s103
    %s118 = sphi 0, %s104
    %s122 = sphi 0, %s122
    %s124 = sphi 0, %s122
    %s125 = sphi 0, %s124
    %s139 = sphi 0, %s125
    %s145 = sphi 0, %s147
    %s148 = sphi 0, %s145
    %s149 = sphi 0, %s148
    %s165 = sphi 0, %s149
  $region4: #{se_block.2} parent=0 // loop_header_branch
    %14 = sbr.rel (%p12) target = $region8
  $region5: #{se_block.2} parent=0 // loop_body
    %s16 = ssub.s32 %s11, 1
    %s17 = ssub.s32 %s11, 2
    %s24 = sadd.s32 1, %s19
    %p25 = scmp.ge.s32.totalorder %s24, 1
    %s26 = scalar_select %p25, 0, %s24
    %s27 = sadd.s32 1, %s18
    %s28 = scalar_select %p25, %s27, %s18
    %p29 = scmp.ge.s32.totalorder %s28, 2
    %s30 = scalar_select %p29, 0, %s28
    %s31 = ssub.s32 %s18, %s30
    %s32 = ssub.s32 %s19, %s26
    %s33 = sor.u32 %s31, %s32
    %p34 = scmp.eq.s32.totalorder %s33, 0
    %s36 = sadd.s32 %s35, 1
    %s37 = scalar_select %p34, %s35, %s36
    %p40 = pneg %p34
    %p41 = scmp.eq.s32.totalorder %s11, 1
    %p42 = por %p40, %p41
    %p43 = scmp.ne.s32.totalorder %s35, %s38
    %p44 = scmp.eq.s32.totalorder %s11, 0
    %p45 = por %p43, %p44
    %p46 = scmp.ne.s32.totalorder %s35, %s38
    %p47 = scmp.eq.s32.totalorder %s16, 1
    %p48 = por %p46, %p47
    %p49 = scmp.ne.s32.totalorder %s38, %s39
    %p50 = scmp.eq.s32.totalorder %s16, 0
    %p51 = por %p49, %p50
    %p52 = scmp.ne.s32.totalorder %s38, %s39
    %p53 = scmp.eq.s32.totalorder %s17, 1
    %p54 = por %p52, %p53
    %p56 = scmp.ne.s32.totalorder %s39, %s55
    %p57 = scmp.eq.s32.totalorder %s17, 0
    %p58 = por %p56, %p57
    %s60 = sadd.s32 %s59, 1
    %p63 = scmp.eq.s32.totalorder %s11, 1
    %p64 = scmp.ne.s32.totalorder %s59, %s61
    %p65 = scmp.eq.s32.totalorder %s11, 0
    %p66 = por %p64, %p65
    %p67 = scmp.ne.s32.totalorder %s59, %s61
    %p68 = scmp.eq.s32.totalorder %s16, 1
    %p69 = por %p67, %p68
    %p70 = scmp.ne.s32.totalorder %s61, %s62
    %p71 = scmp.eq.s32.totalorder %s16, 0
    %p72 = por %p70, %p71
    %p73 = scmp.ne.s32.totalorder %s61, %s62
    %p74 = scmp.eq.s32.totalorder %s17, 1
    %p75 = por %p73, %p74
    %p77 = scmp.ne.s32.totalorder %s62, %s76
    %p78 = scmp.eq.s32.totalorder %s17, 0
    %p79 = por %p77, %p78
    %s81 = sadd.s32 %s80, 1
    %p84 = scmp.eq.s32.totalorder %s11, 1
    %p85 = scmp.ne.s32.totalorder %s80, %s82
    %p86 = scmp.eq.s32.totalorder %s11, 0
    %p87 = por %p85, %p86
    %p88 = scmp.ne.s32.totalorder %s80, %s82
    %p89 = scmp.eq.s32.totalorder %s16, 1
    %p90 = por %p88, %p89
    %p91 = scmp.ne.s32.totalorder %s82, %s83
    %p92 = scmp.eq.s32.totalorder %s16, 0
    %p93 = por %p91, %p92
    %p94 = scmp.ne.s32.totalorder %s82, %s83
    %p95 = scmp.eq.s32.totalorder %s17, 1
    %p96 = por %p94, %p95
    %p98 = scmp.ne.s32.totalorder %s83, %s97
    %p99 = scmp.eq.s32.totalorder %s17, 0
    %p100 = por %p98, %p99
    %s102 = sadd.s32 %s101, 1
    %p105 = scmp.eq.s32.totalorder %s11, 1
    %p106 = scmp.ne.s32.totalorder %s101, %s103
    %p107 = scmp.eq.s32.totalorder %s11, 0
    %p108 = por %p106, %p107
    %p109 = scmp.ne.s32.totalorder %s101, %s103
    %p110 = scmp.eq.s32.totalorder %s16, 1
    %p111 = por %p109, %p110
    %p112 = scmp.ne.s32.totalorder %s103, %s104
    %p113 = scmp.eq.s32.totalorder %s16, 0
    %p114 = por %p112, %p113
    %p115 = scmp.ne.s32.totalorder %s103, %s104
    %p116 = scmp.eq.s32.totalorder %s17, 1
    %p117 = por %p115, %p116
    %p119 = scmp.ne.s32.totalorder %s104, %s118
    %p120 = scmp.eq.s32.totalorder %s17, 0
    %p121 = por %p119, %p120
    %s123 = sadd.s32 %s122, 1
    %p126 = scmp.eq.s32.totalorder %s11, 1
    %p127 = scmp.ne.s32.totalorder %s122, %s124
    %p128 = scmp.eq.s32.totalorder %s11, 0
    %p129 = por %p127, %p128
    %p130 = scmp.ne.s32.totalorder %s122, %s124
    %p131 = scmp.eq.s32.totalorder %s16, 1
    %p132 = por %p130, %p131
    %p133 = scmp.ne.s32.totalorder %s124, %s125
    %p134 = scmp.eq.s32.totalorder %s16, 0
    %p135 = por %p133, %p134
    %p136 = scmp.ne.s32.totalorder %s124, %s125
    %p137 = scmp.eq.s32.totalorder %s17, 1
    %p138 = por %p136, %p137
    %p140 = scmp.ne.s32.totalorder %s125, %s139
    %p141 = scmp.eq.s32.totalorder %s17, 0
    %p142 = por %p140, %p141
    %s143 = ssub.s32 %s18, %s30
    %p144 = scmp.eq.s32.totalorder %s143, 0
    %s146 = sadd.s32 %s145, 1
    %s147 = scalar_select %p144, %s145, %s146
    %p150 = pneg %p144
    %p151 = scmp.eq.s32.totalorder %s11, 1
    %p152 = por %p150, %p151
    %p153 = scmp.ne.s32.totalorder %s145, %s148
    %p154 = scmp.eq.s32.totalorder %s11, 0
    %p155 = por %p153, %p154
    %p156 = scmp.ne.s32.totalorder %s145, %s148
    %p157 = scmp.eq.s32.totalorder %s16, 1
    %p158 = por %p156, %p157
    %p159 = scmp.ne.s32.totalorder %s148, %s149
    %p160 = scmp.eq.s32.totalorder %s16, 0
    %p161 = por %p159, %p160
    %p162 = scmp.ne.s32.totalorder %s148, %s149
    %p163 = scmp.eq.s32.totalorder %s17, 1
    %p164 = por %p162, %p163
    %p166 = scmp.ne.s32.totalorder %s149, %s165
    %p167 = scmp.eq.s32.totalorder %s17, 0
    %p168 = por %p166, %p167
    %p169 = scmp.le.s32.totalorder 1, %s11
    %p170 = scmp.lt.s32.totalorder %s11, 3
    %p171 = pnand %p169, %p170
    %p172 = pneg %p171
    // Predicated region
    $region9: #{se_block.2} parent=5 // pred_check
      _
    $region10: #{se_block.2} parent=5 // pred_check_branch
      %174 = sbr.rel (%p171) target = $region12
    $region11: #{se_block.2} parent=5 // pred_region
      %s175 = ssub.s32 %s11, 1
      // Predicated region
      $region13: #{se_block.2} parent=11 // pred_check
        %p176 = pneg %p72
      $region14: #{se_block.2} parent=11 // pred_check_branch
        %178 = sbr.rel (%p176) target = $region16
      $region15: #{se_block.2} parent=11 // pred_region
        _
      $region16: #{se_block.2} parent=11 // pred_fallthru
        _
      // Predicated region
      $region17: #{se_block.2} parent=11 // pred_check
        %p179 = pneg %p93
      $region18: #{se_block.2} parent=11 // pred_check_branch
        %181 = sbr.rel (%p179) target = $region20
      $region19: #{se_block.2} parent=11 // pred_region
        _
      $region20: #{se_block.2} parent=11 // pred_fallthru
        _
      // Predicated region
      $region21: #{se_block.2} parent=11 // pred_check
        %p182 = pneg %p114
      $region22: #{se_block.2} parent=11 // pred_check_branch
        %184 = sbr.rel (%p182) target = $region24
      $region23: #{se_block.2} parent=11 // pred_region
        _
      $region24: #{se_block.2} parent=11 // pred_fallthru
        _
      // Predicated region
      $region25: #{se_block.2} parent=11 // pred_check
        %p185 = pneg %p135
      $region26: #{se_block.2} parent=11 // pred_check_branch
        %187 = sbr.rel (%p185) target = $region28
      $region27: #{se_block.2} parent=11 // pred_region
        _
      $region28: #{se_block.2} parent=11 // pred_fallthru
        _
    $region12: #{se_block.2} parent=5 // pred_fallthru
      _
    %p188 = scmp.lt.s32.totalorder %s11, 2
    // Predicated region
    $region29: #{se_block.2} parent=5 // pred_check
      %p189 = pneg %p188
    $region30: #{se_block.2} parent=5 // pred_check_branch
      %191 = sbr.rel (%p189) target = $region32
    $region31: #{se_block.2} parent=5 // pred_region
      // Predicated region
      $region33: #{se_block.2} parent=31 // pred_check
        %p192 = pneg %p45
      $region34: #{se_block.2} parent=31 // pred_check_branch
        %194 = sbr.rel (%p192) target = $region36
      $region35: #{se_block.2} parent=31 // pred_region
        %s195 = smul.u32 2, %s19
        %p196 = scmp.lt.s32.totalorder %s18, 1
        %s197 = scalar_select %p196, %s18, 1
        %p198 = scmp.lt.s32.totalorder %s195, 1
        %s199 = scalar_select %p198, %s195, 1
        %s200 = smul.addr %s197, 2
        %s201 = sadd.s32 %s199, %s200
        %s202 = smul.addr %s201, 8
        %s203 = scalar_lea.vmem %s0, %s202
        %s204 = smul.u32 2, %s19
      $region36: #{se_block.2} parent=31 // pred_fallthru
        _
    $region32: #{se_block.2} parent=5 // pred_fallthru
      _
    %p205 = scmp.le.s32.totalorder 1, %s11
    %p206 = scmp.lt.s32.totalorder %s11, 3
    %p207 = pnand %p205, %p206
    %p208 = pneg %p207
    // Predicated region
    $region37: #{se_block.2} parent=5 // pred_check
      _
    $region38: #{se_block.2} parent=5 // pred_check_branch
      %210 = sbr.rel (%p207) target = $region40
    $region39: #{se_block.2} parent=5 // pred_region
      %s211 = ssub.s32 %s11, 1
      %s212 = smul.u32 2, %s21
      %p213 = scmp.lt.s32.totalorder %s20, 1
      %s214 = scalar_select %p213, %s20, 1
      %p215 = scmp.lt.s32.totalorder %s212, 1
      %s216 = scalar_select %p215, %s212, 1
      %s217 = smul.addr %s214, 2
      %s218 = sadd.s32 %s216, %s217
      %s219 = smul.addr %s218, 8
      %s220 = scalar_lea.vmem %s0, %s219
      %p221 = pneg %p51
      %p222 = pneg %p48
      %p223 = pneg %p72
      %p224 = pneg %p69
      %p225 = pneg %p93
      %p226 = pneg %p90
      %p227 = pneg %p114
      %p228 = pneg %p111
      %p229 = pneg %p135
      %p230 = pneg %p132
      %p231 = pneg %p161
      %p232 = pneg %p158
      %p233 = scmp.lt.s32.totalorder %s20, 1
      %s234 = scalar_select %p233, %s20, 1
      %s235 = smul.addr %s234, 8
      %s236 = scalar_lea.vmem %s5, %s235
      %s237 = smul.u32 2, %s21
      %p238 = scmp.lt.s32.totalorder %s20, 1
      %s239 = scalar_select %p238, %s20, 1
      %p240 = scmp.lt.s32.totalorder %s237, 1
      %s241 = scalar_select %p240, %s237, 1
      %s242 = smul.addr %s239, 2
      %s243 = sadd.s32 %s241, %s242
      %s244 = smul.addr %s243, 8
      %s245 = scalar_lea.vmem %s0, %s244
      %s246 = smul.u32 2, %s21
      %p247 = scmp.lt.s32.totalorder %s20, 1
      %s248 = scalar_select %p247, %s20, 1
      %s249 = smul.addr %s248, 8
      %s250 = scalar_lea.vmem %s5, %s249
      %p251 = scmp.eq.s32.totalorder %s21, 0
      // Predicated region
      $region41: #{se_block.2} parent=39 // pred_check
        %p252 = pneg %p251
      $region42: #{se_block.2} parent=39 // pred_check_branch
        %254 = sbr.rel (%p252) target = $region44
      $region43: #{se_block.2} parent=39 // pred_region
        %255 = vst [vmem:[#allocation2] sm:$0xff] 0.0
        %256 = vst [vmem:[#allocation2 + $0x8] sm:$0xff] 0.0
        %257 = vst [vmem:[#allocation2 + $0x10] sm:$0xff] 0.0
        %258 = vst [vmem:[#allocation2 + $0x18] sm:$0xff] 0.0
        %259 = vst [vmem:[#allocation2 + $0x20] sm:$0xff] 0.0
        %260 = vst [vmem:[#allocation2 + $0x28] sm:$0xff] 0.0
        %261 = vst [vmem:[#allocation2 + $0x30] sm:$0xff] 0.0
        %262 = vst [vmem:[#allocation2 + $0x38] sm:$0xff] 0.0
        %263 = vst [vmem:[#allocation2 + $0x40] sm:$0xff] 0.0
        %264 = vst [vmem:[#allocation2 + $0x48] sm:$0xff] 0.0
        %265 = vst [vmem:[#allocation2 + $0x50] sm:$0xff] 0.0
        %266 = vst [vmem:[#allocation2 + $0x58] sm:$0xff] 0.0
        %267 = vst [vmem:[#allocation2 + $0x60] sm:$0xff] 0.0
        %268 = vst [vmem:[#allocation2 + $0x68] sm:$0xff] 0.0
        %269 = vst [vmem:[#allocation2 + $0x70] sm:$0xff] 0.0
        %270 = vst [vmem:[#allocation2 + $0x78] sm:$0xff] 0.0
      $region44: #{se_block.2} parent=39 // pred_fallthru
        _
      %v271 = vld [vmem:[%s245] sm:$0xff]
      %v272 = vld [vmem:[%s245 + $0x8] sm:$0xff]
      %v273 = vld [vmem:[#allocation2] sm:$0xff]
      %v274 = vadd.f32 %v271, %v272
      %275 = vadd.xlane.f32.xlu0 %v274
      %v276 = vpop.xlane.xlu0 %275
      %v277 = vadd.f32 %v273, %v276
      %vm278 = vcmask 7168
      %279 = vst.msk [vmem:[#allocation2] sm:$0xff] %vm278, %v277
      // Predicated region
      $region45: #{se_block.2} parent=39 // pred_check
        %p280 = pneg %p251
      $region46: #{se_block.2} parent=39 // pred_check_branch
        %282 = sbr.rel (%p280) target = $region48
      $region47: #{se_block.2} parent=39 // pred_region
        %v283 = vld [vmem:[#allocation2] sm:$0xff]
        %v284 = vld [vmem:[#allocation2 + $0x8] sm:$0xff]
        %v285 = vld [vmem:[#allocation2 + $0x10] sm:$0xff]
        %v286 = vld [vmem:[#allocation2 + $0x18] sm:$0xff]
        %v287 = vld [vmem:[#allocation2 + $0x20] sm:$0xff]
        %v288 = vld [vmem:[#allocation2 + $0x28] sm:$0xff]
        %v289 = vld [vmem:[#allocation2 + $0x30] sm:$0xff]
        %v290 = vld [vmem:[#allocation2 + $0x38] sm:$0xff]
        %v291 = vld [vmem:[#allocation2 + $0x40] sm:$0xff]
        %v292 = vld [vmem:[#allocation2 + $0x48] sm:$0xff]
        %v293 = vld [vmem:[#allocation2 + $0x50] sm:$0xff]
        %v294 = vld [vmem:[#allocation2 + $0x58] sm:$0xff]
        %v295 = vld [vmem:[#allocation2 + $0x60] sm:$0xff]
        %v296 = vld [vmem:[#allocation2 + $0x68] sm:$0xff]
        %v297 = vld [vmem:[#allocation2 + $0x70] sm:$0xff]
        %v298 = vld [vmem:[#allocation2 + $0x78] sm:$0xff]
        %v299 = vmul.f32 %v283, 0.00390625
        %v300 = vmul.f32 %v284, 0.00390625
        %v301 = vmul.f32 %v285, 0.00390625
        %v302 = vmul.f32 %v286, 0.00390625
        %v303 = vmul.f32 %v287, 0.00390625
        %v304 = vmul.f32 %v288, 0.00390625
        %v305 = vmul.f32 %v289, 0.00390625
        %v306 = vmul.f32 %v290, 0.00390625
        %v307 = vmul.f32 %v291, 0.00390625
        %v308 = vmul.f32 %v292, 0.00390625
        %v309 = vmul.f32 %v293, 0.00390625
        %v310 = vmul.f32 %v294, 0.00390625
        %v311 = vmul.f32 %v295, 0.00390625
        %v312 = vmul.f32 %v296, 0.00390625
        %v313 = vmul.f32 %v297, 0.00390625
        %v314 = vmul.f32 %v298, 0.00390625
        %v315 = vld [vmem:[%s1] sm:$0xff]
        %v316 = vld [vmem:[%s1 + $0x8] sm:$0xff]
        %v317 = vld [vmem:[%s1 + $0x10] sm:$0xff]
        %v318 = vld [vmem:[%s1 + $0x18] sm:$0xff]
        %v319 = vld [vmem:[%s1 + $0x20] sm:$0xff]
        %v320 = vld [vmem:[%s1 + $0x28] sm:$0xff]
        %v321 = vld [vmem:[%s1 + $0x30] sm:$0xff]
        %v322 = vld [vmem:[%s1 + $0x38] sm:$0xff]
        %v323 = vld [vmem:[%s1 + $0x40] sm:$0xff]
        %v324 = vld [vmem:[%s1 + $0x48] sm:$0xff]
        %v325 = vld [vmem:[%s1 + $0x50] sm:$0xff]
        %v326 = vld [vmem:[%s1 + $0x58] sm:$0xff]
        %v327 = vld [vmem:[%s1 + $0x60] sm:$0xff]
        %v328 = vld [vmem:[%s1 + $0x68] sm:$0xff]
        %v329 = vld [vmem:[%s1 + $0x70] sm:$0xff]
        %v330 = vld [vmem:[%s1 + $0x78] sm:$0xff]
        %v331 = vld [vmem:[%s2] sm:$0xff]
        %v332 = vld [vmem:[%s2 + $0x8] sm:$0xff]
        %v333 = vld [vmem:[%s2 + $0x10] sm:$0xff]
        %v334 = vld [vmem:[%s2 + $0x18] sm:$0xff]
        %v335 = vld [vmem:[%s2 + $0x20] sm:$0xff]
        %v336 = vld [vmem:[%s2 + $0x28] sm:$0xff]
        %v337 = vld [vmem:[%s2 + $0x30] sm:$0xff]
        %v338 = vld [vmem:[%s2 + $0x38] sm:$0xff]
        %v339 = vld [vmem:[%s2 + $0x40] sm:$0xff]
        %v340 = vld [vmem:[%s2 + $0x48] sm:$0xff]
        %v341 = vld [vmem:[%s2 + $0x50] sm:$0xff]
        %v342 = vld [vmem:[%s2 + $0x58] sm:$0xff]
        %v343 = vld [vmem:[%s2 + $0x60] sm:$0xff]
        %v344 = vld [vmem:[%s2 + $0x68] sm:$0xff]
        %v345 = vld [vmem:[%s2 + $0x70] sm:$0xff]
        %v346 = vld [vmem:[%s2 + $0x78] sm:$0xff]
        %348 = vset.pattern.permute.xlu0 0
        %349 = vperm.xlu0 %348, %v331
        %v350 = vpop.permute.xlu0 %349
        %353 = vset.pattern.permute.xlu0 0
        %354 = vperm.xlu0 %353, %v332
        %v355 = vpop.permute.xlu0 %354
        %358 = vset.pattern.permute.xlu0 0
        %359 = vperm.xlu0 %358, %v333
        %v360 = vpop.permute.xlu0 %359
        %363 = vset.pattern.permute.xlu0 0
        %364 = vperm.xlu0 %363, %v334
        %v365 = vpop.permute.xlu0 %364
        %368 = vset.pattern.permute.xlu0 0
        %369 = vperm.xlu0 %368, %v335
        %v370 = vpop.permute.xlu0 %369
        %373 = vset.pattern.permute.xlu0 0
        %374 = vperm.xlu0 %373, %v336
        %v375 = vpop.permute.xlu0 %374
        %378 = vset.pattern.permute.xlu0 0
        %379 = vperm.xlu0 %378, %v337
        %v380 = vpop.permute.xlu0 %379
        %383 = vset.pattern.permute.xlu0 0
        %384 = vperm.xlu0 %383, %v338
        %v385 = vpop.permute.xlu0 %384
        %388 = vset.pattern.permute.xlu0 0
        %389 = vperm.xlu0 %388, %v339
        %v390 = vpop.permute.xlu0 %389
        %393 = vset.pattern.permute.xlu0 0
        %394 = vperm.xlu0 %393, %v340
        %v395 = vpop.permute.xlu0 %394
        %398 = vset.pattern.permute.xlu0 0
        %399 = vperm.xlu0 %398, %v341
        %v400 = vpop.permute.xlu0 %399
        %403 = vset.pattern.permute.xlu0 0
        %404 = vperm.xlu0 %403, %v342
        %v405 = vpop.permute.xlu0 %404
        %408 = vset.pattern.permute.xlu0 0
        %409 = vperm.xlu0 %408, %v343
        %v410 = vpop.permute.xlu0 %409
        %413 = vset.pattern.permute.xlu0 0
        %414 = vperm.xlu0 %413, %v344
        %v415 = vpop.permute.xlu0 %414
        %418 = vset.pattern.permute.xlu0 0
        %419 = vperm.xlu0 %418, %v345
        %v420 = vpop.permute.xlu0 %419
        %423 = vset.pattern.permute.xlu0 0
        %424 = vperm.xlu0 %423, %v346
        %v425 = vpop.permute.xlu0 %424
        %427 = vmatprep.subr.mxu0 0.0
        %428 = vmatpush1.msra.mxu0 %v299
        %429 = vmatprep.subr.mxu0 0.0
        %430 = vmatpush1.msra.mxu0 %v300
        %431 = vmatprep.subr.mxu0 0.0
        %432 = vmatpush1.msra.mxu0 %v301
        %433 = vmatprep.subr.mxu0 0.0
        %434 = vmatpush1.msra.mxu0 %v302
        %435 = vmatprep.subr.mxu0 0.0
        %436 = vmatpush1.msra.mxu0 %v303
        %437 = vmatprep.subr.mxu0 0.0
        %438 = vmatpush1.msra.mxu0 %v304
        %439 = vmatprep.subr.mxu0 0.0
        %440 = vmatpush1.msra.mxu0 %v305
        %441 = vmatprep.subr.mxu0 0.0
        %442 = vmatpush1.msra.mxu0 %v306
        %443 = vmatprep.subr.mxu0 0.0
        %444 = vmatpush1.msra.mxu0 %v307
        %445 = vmatprep.subr.mxu0 0.0
        %446 = vmatpush1.msra.mxu0 %v308
        %447 = vmatprep.subr.mxu0 0.0
        %448 = vmatpush1.msra.mxu0 %v309
        %449 = vmatprep.subr.mxu0 0.0
        %450 = vmatpush1.msra.mxu0 %v310
        %451 = vmatprep.subr.mxu0 0.0
        %452 = vmatpush1.msra.mxu0 %v311
        %453 = vmatprep.subr.mxu0 0.0
        %454 = vmatpush1.msra.mxu0 %v312
        %455 = vmatprep.subr.mxu0 0.0
        %456 = vmatpush1.msra.mxu0 %v313
        %457 = vmatprep.subr.mxu0 0.0
        %458 = vmatpush1.msra.mxu0 %v314
        %459 = vmatprep.subr.mxu0 0.0
        %460 = vmatpush1.msra.mxu0 0.0
        %461 = vmatprep.subr.mxu0 0.0
        %462 = vmatpush1.msra.mxu0 0.0
        %463 = vmatprep.subr.mxu0 0.0
        %464 = vmatpush1.msra.mxu0 0.0
        %465 = vmatprep.subr.mxu0 0.0
        %466 = vmatpush1.msra.mxu0 0.0
        %467 = vmatprep.subr.mxu0 0.0
        %468 = vmatpush1.msra.mxu0 0.0
        %469 = vmatprep.subr.mxu0 0.0
        %470 = vmatpush1.msra.mxu0 0.0
        %471 = vmatprep.subr.mxu0 0.0
        %472 = vmatpush1.msra.mxu0 0.0
        %473 = vmatprep.subr.mxu0 0.0
        %474 = vmatpush1.msra.mxu0 0.0
        %475 = vmatprep.subr.mxu0 0.0
        %476 = vmatpush1.msra.mxu0 0.0
        %477 = vmatprep.subr.mxu0 0.0
        %478 = vmatpush1.msra.mxu0 0.0
        %479 = vmatprep.subr.mxu0 0.0
        %480 = vmatpush1.msra.mxu0 0.0
        %481 = vmatprep.subr.mxu0 0.0
        %482 = vmatpush1.msra.mxu0 0.0
        %483 = vmatprep.subr.mxu0 0.0
        %484 = vmatpush1.msra.mxu0 0.0
        %485 = vmatprep.subr.mxu0 0.0
        %486 = vmatpush1.msra.mxu0 0.0
        %487 = vmatprep.subr.mxu0 0.0
        %488 = vmatpush1.msra.mxu0 0.0
        %489 = vmatprep.subr.mxu0 0.0
        %490 = vmatpush1.msra.mxu0 0.0
        %491 = vmatprep.mubr.f32.mxu0 0.0
        %492 = vmatmul.mubr.f32.gmra.mrb[0].mxu0 %v315
        %v493 = vpop.f32.mrb[0].mxu0
        %v494 = vadd.f32 %v350, %v493
        %v495 = vpop.f32.mrb[0].mxu0
        %496 = vmatprep.mubr.f32.mxu0 0.0
        %497 = vmatmul.mubr.f32.gmra.mrb[0].mxu0 %v316
        %v498 = vpop.f32.mrb[0].mxu0
        %v499 = vadd.f32 %v355, %v498
        %v500 = vpop.f32.mrb[0].mxu0
        %501 = vmatprep.mubr.f32.mxu0 0.0
        %502 = vmatmul.mubr.f32.gmra.mrb[0].mxu0 %v317
        %v503 = vpop.f32.mrb[0].mxu0
        %v504 = vadd.f32 %v360, %v503
        %v505 = vpop.f32.mrb[0].mxu0
        %506 = vmatprep.mubr.f32.mxu0 0.0
        %507 = vmatmul.mubr.f32.gmra.mrb[0].mxu0 %v318
        %v508 = vpop.f32.mrb[0].mxu0
        %v509 = vadd.f32 %v365, %v508
        %v510 = vpop.f32.mrb[0].mxu0
        %511 = vmatprep.mubr.f32.mxu0 0.0
        %512 = vmatmul.mubr.f32.gmra.mrb[0].mxu0 %v319
        %v513 = vpop.f32.mrb[0].mxu0
        %v514 = vadd.f32 %v370, %v513
        %v515 = vpop.f32.mrb[0].mxu0
        %516 = vmatprep.mubr.f32.mxu0 0.0
        %517 = vmatmul.mubr.f32.gmra.mrb[0].mxu0 %v320
        %v518 = vpop.f32.mrb[0].mxu0
        %v519 = vadd.f32 %v375, %v518
        %v520 = vpop.f32.mrb[0].mxu0
        %521 = vmatprep.mubr.f32.mxu0 0.0
        %522 = vmatmul.mubr.f32.gmra.mrb[0].mxu0 %v321
        %v523 = vpop.f32.mrb[0].mxu0
        %v524 = vadd.f32 %v380, %v523
        %v525 = vpop.f32.mrb[0].mxu0
        %526 = vmatprep.mubr.f32.mxu0 0.0
        %527 = vmatmul.mubr.f32.gmra.mrb[0].mxu0 %v322
        %v528 = vpop.f32.mrb[0].mxu0
        %v529 = vadd.f32 %v385, %v528
        %v530 = vpop.f32.mrb[0].mxu0
        %531 = vmatprep.mubr.f32.mxu0 0.0
        %532 = vmatmul.mubr.f32.gmra.mrb[0].mxu0 %v323
        %v533 = vpop.f32.mrb[0].mxu0
        %v534 = vadd.f32 %v390, %v533
        %v535 = vpop.f32.mrb[0].mxu0
        %536 = vmatprep.mubr.f32.mxu0 0.0
        %537 = vmatmul.mubr.f32.gmra.mrb[0].mxu0 %v324
        %v538 = vpop.f32.mrb[0].mxu0
        %v539 = vadd.f32 %v395, %v538
        %v540 = vpop.f32.mrb[0].mxu0
        %541 = vmatprep.mubr.f32.mxu0 0.0
        %542 = vmatmul.mubr.f32.gmra.mrb[0].mxu0 %v325
        %v543 = vpop.f32.mrb[0].mxu0
        %v544 = vadd.f32 %v400, %v543
        %v545 = vpop.f32.mrb[0].mxu0
        %546 = vmatprep.mubr.f32.mxu0 0.0
        %547 = vmatmul.mubr.f32.gmra.mrb[0].mxu0 %v326
        %v548 = vpop.f32.mrb[0].mxu0
        %v549 = vadd.f32 %v405, %v548
        %v550 = vpop.f32.mrb[0].mxu0
        %551 = vmatprep.mubr.f32.mxu0 0.0
        %552 = vmatmul.mubr.f32.gmra.mrb[0].mxu0 %v327
        %v553 = vpop.f32.mrb[0].mxu0
        %v554 = vadd.f32 %v410, %v553
        %v555 = vpop.f32.mrb[0].mxu0
        %556 = vmatprep.mubr.f32.mxu0 0.0
        %557 = vmatmul.mubr.f32.gmra.mrb[0].mxu0 %v328
        %v558 = vpop.f32.mrb[0].mxu0
        %v559 = vadd.f32 %v415, %v558
        %v560 = vpop.f32.mrb[0].mxu0
        %561 = vmatprep.mubr.f32.mxu0 0.0
        %562 = vmatmul.mubr.f32.gmra.mrb[0].mxu0 %v329
        %v563 = vpop.f32.mrb[0].mxu0
        %v564 = vadd.f32 %v420, %v563
        %v565 = vpop.f32.mrb[0].mxu0
        %566 = vmatprep.mubr.f32.mxu0 0.0
        %567 = vmatmul.mubr.f32.gmra.mrb[0].mxu0 %v330
        %v568 = vpop.f32.mrb[0].mxu0
        %v569 = vadd.f32 %v425, %v568
        %v570 = vpop.f32.mrb[0].mxu0
        %571 = vdwg.mxu0
        %v572 = vxor.u32 %v494, 2147483648
        %v573 = vxor.u32 %v499, 2147483648
        %v574 = vxor.u32 %v504, 2147483648
        %v575 = vxor.u32 %v509, 2147483648
        %v576 = vxor.u32 %v514, 2147483648
        %v577 = vxor.u32 %v519, 2147483648
        %v578 = vxor.u32 %v524, 2147483648
        %v579 = vxor.u32 %v529, 2147483648
        %v580 = vxor.u32 %v534, 2147483648
        %v581 = vxor.u32 %v539, 2147483648
        %v582 = vxor.u32 %v544, 2147483648
        %v583 = vxor.u32 %v549, 2147483648
        %v584 = vxor.u32 %v554, 2147483648
        %v585 = vxor.u32 %v559, 2147483648
        %v586 = vxor.u32 %v564, 2147483648
        %v587 = vxor.u32 %v569, 2147483648
        %v588 = vmul.f32 %v572, 1.442695
        %v589 = vpow.pop %v588
        %v590 = vmul.f32 %v573, 1.442695
        %v591 = vpow.pop %v590
        %v592 = vmul.f32 %v574, 1.442695
        %v593 = vpow.pop %v592
        %v594 = vmul.f32 %v575, 1.442695
        %v595 = vpow.pop %v594
        %v596 = vmul.f32 %v576, 1.442695
        %v597 = vpow.pop %v596
        %v598 = vmul.f32 %v577, 1.442695
        %v599 = vpow.pop %v598
        %v600 = vmul.f32 %v578, 1.442695
        %v601 = vpow.pop %v600
        %v602 = vmul.f32 %v579, 1.442695
        %v603 = vpow.pop %v602
        %v604 = vmul.f32 %v580, 1.442695
        %v605 = vpow.pop %v604
        %v606 = vmul.f32 %v581, 1.442695
        %v607 = vpow.pop %v606
        %v608 = vmul.f32 %v582, 1.442695
        %v609 = vpow.pop %v608
        %v610 = vmul.f32 %v583, 1.442695
        %v611 = vpow.pop %v610
        %v612 = vmul.f32 %v584, 1.442695
        %v613 = vpow.pop %v612
        %v614 = vmul.f32 %v585, 1.442695
        %v615 = vpow.pop %v614
        %v616 = vmul.f32 %v586, 1.442695
        %v617 = vpow.pop %v616
        %v618 = vmul.f32 %v587, 1.442695
        %v619 = vpow.pop %v618
        %v620 = vadd.f32 %v589, 1.0
        %v621 = vadd.f32 %v591, 1.0
        %v622 = vadd.f32 %v593, 1.0
        %v623 = vadd.f32 %v595, 1.0
        %v624 = vadd.f32 %v597, 1.0
        %v625 = vadd.f32 %v599, 1.0
        %v626 = vadd.f32 %v601, 1.0
        %v627 = vadd.f32 %v603, 1.0
        %v628 = vadd.f32 %v605, 1.0
        %v629 = vadd.f32 %v607, 1.0
        %v630 = vadd.f32 %v609, 1.0
        %v631 = vadd.f32 %v611, 1.0
        %v632 = vadd.f32 %v613, 1.0
        %v633 = vadd.f32 %v615, 1.0
        %v634 = vadd.f32 %v617, 1.0
        %v635 = vadd.f32 %v619, 1.0
        %v636 = vrcp.pop %v620
        %v637 = vmul.f32 1.0, %v636
        %v638 = vrcp.pop %v621
        %v639 = vmul.f32 1.0, %v638
        %v640 = vrcp.pop %v622
        %v641 = vmul.f32 1.0, %v640
        %v642 = vrcp.pop %v623
        %v643 = vmul.f32 1.0, %v642
        %v644 = vrcp.pop %v624
        %v645 = vmul.f32 1.0, %v644
        %v646 = vrcp.pop %v625
        %v647 = vmul.f32 1.0, %v646
        %v648 = vrcp.pop %v626
        %v649 = vmul.f32 1.0, %v648
        %v650 = vrcp.pop %v627
        %v651 = vmul.f32 1.0, %v650
        %v652 = vrcp.pop %v628
        %v653 = vmul.f32 1.0, %v652
        %v654 = vrcp.pop %v629
        %v655 = vmul.f32 1.0, %v654
        %v656 = vrcp.pop %v630
        %v657 = vmul.f32 1.0, %v656
        %v658 = vrcp.pop %v631
        %v659 = vmul.f32 1.0, %v658
        %v660 = vrcp.pop %v632
        %v661 = vmul.f32 1.0, %v660
        %v662 = vrcp.pop %v633
        %v663 = vmul.f32 1.0, %v662
        %v664 = vrcp.pop %v634
        %v665 = vmul.f32 1.0, %v664
        %v666 = vrcp.pop %v635
        %v667 = vmul.f32 1.0, %v666
        %v668 = vmul.f32 %v494, %v637
        %v669 = vmul.f32 %v499, %v639
        %v670 = vmul.f32 %v504, %v641
        %v671 = vmul.f32 %v509, %v643
        %v672 = vmul.f32 %v514, %v645
        %v673 = vmul.f32 %v519, %v647
        %v674 = vmul.f32 %v524, %v649
        %v675 = vmul.f32 %v529, %v651
        %v676 = vmul.f32 %v534, %v653
        %v677 = vmul.f32 %v539, %v655
        %v678 = vmul.f32 %v544, %v657
        %v679 = vmul.f32 %v549, %v659
        %v680 = vmul.f32 %v554, %v661
        %v681 = vmul.f32 %v559, %v663
        %v682 = vmul.f32 %v564, %v665
        %v683 = vmul.f32 %v569, %v667
        %v684 = vld [vmem:[%s3] sm:$0xff]
        %v685 = vld [vmem:[%s3 + $0x8] sm:$0xff]
        %v686 = vld [vmem:[%s3 + $0x10] sm:$0xff]
        %v687 = vld [vmem:[%s3 + $0x18] sm:$0xff]
        %v688 = vld [vmem:[%s3 + $0x20] sm:$0xff]
        %v689 = vld [vmem:[%s3 + $0x28] sm:$0xff]
        %v690 = vld [vmem:[%s3 + $0x30] sm:$0xff]
        %v691 = vld [vmem:[%s3 + $0x38] sm:$0xff]
        %v692 = vld [vmem:[%s3 + $0x40] sm:$0xff]
        %v693 = vld [vmem:[%s3 + $0x48] sm:$0xff]
        %v694 = vld [vmem:[%s3 + $0x50] sm:$0xff]
        %v695 = vld [vmem:[%s3 + $0x58] sm:$0xff]
        %v696 = vld [vmem:[%s3 + $0x60] sm:$0xff]
        %v697 = vld [vmem:[%s3 + $0x68] sm:$0xff]
        %v698 = vld [vmem:[%s3 + $0x70] sm:$0xff]
        %v699 = vld [vmem:[%s3 + $0x78] sm:$0xff]
        %v700 = vld [vmem:[%s4] sm:$0xff]
        %v701 = vld [vmem:[%s4 + $0x8] sm:$0xff]
        %v702 = vld [vmem:[%s4 + $0x10] sm:$0xff]
        %v703 = vld [vmem:[%s4 + $0x18] sm:$0xff]
        %v704 = vld [vmem:[%s4 + $0x20] sm:$0xff]
        %v705 = vld [vmem:[%s4 + $0x28] sm:$0xff]
        %v706 = vld [vmem:[%s4 + $0x30] sm:$0xff]
        %v707 = vld [vmem:[%s4 + $0x38] sm:$0xff]
        %v708 = vld [vmem:[%s4 + $0x40] sm:$0xff]
        %v709 = vld [vmem:[%s4 + $0x48] sm:$0xff]
        %v710 = vld [vmem:[%s4 + $0x50] sm:$0xff]
        %v711 = vld [vmem:[%s4 + $0x58] sm:$0xff]
        %v712 = vld [vmem:[%s4 + $0x60] sm:$0xff]
        %v713 = vld [vmem:[%s4 + $0x68] sm:$0xff]
        %v714 = vld [vmem:[%s4 + $0x70] sm:$0xff]
        %v715 = vld [vmem:[%s4 + $0x78] sm:$0xff]
        %717 = vset.pattern.permute.xlu0 0
        %718 = vperm.xlu0 %717, %v700
        %v719 = vpop.permute.xlu0 %718
        %722 = vset.pattern.permute.xlu0 0
        %723 = vperm.xlu0 %722, %v701
        %v724 = vpop.permute.xlu0 %723
        %726 = vset.pattern.permute.xlu0 0
        %727 = vperm.xlu0 %726, %v702
        %v728 = vpop.permute.xlu0 %727
        %730 = vset.pattern.permute.xlu0 0
        %731 = vperm.xlu0 %730, %v703
        %v732 = vpop.permute.xlu0 %731
        %734 = vset.pattern.permute.xlu0 0
        %735 = vperm.xlu0 %734, %v704
        %v736 = vpop.permute.xlu0 %735
        %738 = vset.pattern.permute.xlu0 0
        %739 = vperm.xlu0 %738, %v705
        %v740 = vpop.permute.xlu0 %739
        %742 = vset.pattern.permute.xlu0 0
        %743 = vperm.xlu0 %742, %v706
        %v744 = vpop.permute.xlu0 %743
        %746 = vset.pattern.permute.xlu0 0
        %747 = vperm.xlu0 %746, %v707
        %v748 = vpop.permute.xlu0 %747
        %750 = vset.pattern.permute.xlu0 0
        %751 = vperm.xlu0 %750, %v708
        %v752 = vpop.permute.xlu0 %751
        %754 = vset.pattern.permute.xlu0 0
        %755 = vperm.xlu0 %754, %v709
        %v756 = vpop.permute.xlu0 %755
        %758 = vset.pattern.permute.xlu0 0
        %759 = vperm.xlu0 %758, %v710
        %v760 = vpop.permute.xlu0 %759
        %762 = vset.pattern.permute.xlu0 0
        %763 = vperm.xlu0 %762, %v711
        %v764 = vpop.permute.xlu0 %763
        %766 = vset.pattern.permute.xlu0 0
        %767 = vperm.xlu0 %766, %v712
        %v768 = vpop.permute.xlu0 %767
        %770 = vset.pattern.permute.xlu0 0
        %771 = vperm.xlu0 %770, %v713
        %v772 = vpop.permute.xlu0 %771
        %774 = vset.pattern.permute.xlu0 0
        %775 = vperm.xlu0 %774, %v714
        %v776 = vpop.permute.xlu0 %775
        %778 = vset.pattern.permute.xlu0 0
        %779 = vperm.xlu0 %778, %v715
        %v780 = vpop.permute.xlu0 %779
        %781 = vmatprep.subr.mxu0 0.0
        %782 = vmatpush1.msra.mxu0 %v668
        %783 = vmatprep.subr.mxu0 0.0
        %784 = vmatpush1.msra.mxu0 %v669
        %785 = vmatprep.subr.mxu0 0.0
        %786 = vmatpush1.msra.mxu0 %v670
        %787 = vmatprep.subr.mxu0 0.0
        %788 = vmatpush1.msra.mxu0 %v671
        %789 = vmatprep.subr.mxu0 0.0
        %790 = vmatpush1.msra.mxu0 %v672
        %791 = vmatprep.subr.mxu0 0.0
        %792 = vmatpush1.msra.mxu0 %v673
        %793 = vmatprep.subr.mxu0 0.0
        %794 = vmatpush1.msra.mxu0 %v674
        %795 = vmatprep.subr.mxu0 0.0
        %796 = vmatpush1.msra.mxu0 %v675
        %797 = vmatprep.subr.mxu0 0.0
        %798 = vmatpush1.msra.mxu0 %v676
        %799 = vmatprep.subr.mxu0 0.0
        %800 = vmatpush1.msra.mxu0 %v677
        %801 = vmatprep.subr.mxu0 0.0
        %802 = vmatpush1.msra.mxu0 %v678
        %803 = vmatprep.subr.mxu0 0.0
        %804 = vmatpush1.msra.mxu0 %v679
        %805 = vmatprep.subr.mxu0 0.0
        %806 = vmatpush1.msra.mxu0 %v680
        %807 = vmatprep.subr.mxu0 0.0
        %808 = vmatpush1.msra.mxu0 %v681
        %809 = vmatprep.subr.mxu0 0.0
        %810 = vmatpush1.msra.mxu0 %v682
        %811 = vmatprep.subr.mxu0 0.0
        %812 = vmatpush1.msra.mxu0 %v683
        %813 = vmatprep.subr.mxu0 0.0
        %814 = vmatpush1.msra.mxu0 0.0
        %815 = vmatprep.subr.mxu0 0.0
        %816 = vmatpush1.msra.mxu0 0.0
        %817 = vmatprep.subr.mxu0 0.0
        %818 = vmatpush1.msra.mxu0 0.0
        %819 = vmatprep.subr.mxu0 0.0
        %820 = vmatpush1.msra.mxu0 0.0
        %821 = vmatprep.subr.mxu0 0.0
        %822 = vmatpush1.msra.mxu0 0.0
        %823 = vmatprep.subr.mxu0 0.0
        %824 = vmatpush1.msra.mxu0 0.0
        %825 = vmatprep.subr.mxu0 0.0
        %826 = vmatpush1.msra.mxu0 0.0
        %827 = vmatprep.subr.mxu0 0.0
        %828 = vmatpush1.msra.mxu0 0.0
        %829 = vmatprep.subr.mxu0 0.0
        %830 = vmatpush1.msra.mxu0 0.0
        %831 = vmatprep.subr.mxu0 0.0
        %832 = vmatpush1.msra.mxu0 0.0
        %833 = vmatprep.subr.mxu0 0.0
        %834 = vmatpush1.msra.mxu0 0.0
        %835 = vmatprep.subr.mxu0 0.0
        %836 = vmatpush1.msra.mxu0 0.0
        %837 = vmatprep.subr.mxu0 0.0
        %838 = vmatpush1.msra.mxu0 0.0
        %839 = vmatprep.subr.mxu0 0.0
        %840 = vmatpush1.msra.mxu0 0.0
        %841 = vmatprep.subr.mxu0 0.0
        %842 = vmatpush1.msra.mxu0 0.0
        %843 = vmatprep.subr.mxu0 0.0
        %844 = vmatpush1.msra.mxu0 0.0
        %845 = vmatprep.mubr.f32.mxu0 0.0
        %846 = vmatmul.mubr.f32.gmra.mrb[0].mxu0 %v684
        %v847 = vpop.f32.mrb[0].mxu0
        %v848 = vadd.f32 %v719, %v847
        %v849 = vpop.f32.mrb[0].mxu0
        %850 = vmatprep.mubr.f32.mxu0 0.0
        %851 = vmatmul.mubr.f32.gmra.mrb[0].mxu0 %v685
        %v852 = vpop.f32.mrb[0].mxu0
        %v853 = vpop.f32.mrb[0].mxu0
        %854 = vmatprep.mubr.f32.mxu0 0.0
        %855 = vmatmul.mubr.f32.gmra.mrb[0].mxu0 %v686
        %v856 = vpop.f32.mrb[0].mxu0
        %v857 = vpop.f32.mrb[0].mxu0
        %858 = vmatprep.mubr.f32.mxu0 0.0
        %859 = vmatmul.mubr.f32.gmra.mrb[0].mxu0 %v687
        %v860 = vpop.f32.mrb[0].mxu0
        %v861 = vpop.f32.mrb[0].mxu0
        %862 = vmatprep.mubr.f32.mxu0 0.0
        %863 = vmatmul.mubr.f32.gmra.mrb[0].mxu0 %v688
        %v864 = vpop.f32.mrb[0].mxu0
        %v865 = vpop.f32.mrb[0].mxu0
        %866 = vmatprep.mubr.f32.mxu0 0.0
        %867 = vmatmul.mubr.f32.gmra.mrb[0].mxu0 %v689
        %v868 = vpop.f32.mrb[0].mxu0
        %v869 = vpop.f32.mrb[0].mxu0
        %870 = vmatprep.mubr.f32.mxu0 0.0
        %871 = vmatmul.mubr.f32.gmra.mrb[0].mxu0 %v690
        %v872 = vpop.f32.mrb[0].mxu0
        %v873 = vpop.f32.mrb[0].mxu0
        %874 = vmatprep.mubr.f32.mxu0 0.0
        %875 = vmatmul.mubr.f32.gmra.mrb[0].mxu0 %v691
        %v876 = vpop.f32.mrb[0].mxu0
        %v877 = vpop.f32.mrb[0].mxu0
        %878 = vmatprep.mubr.f32.mxu0 0.0
        %879 = vmatmul.mubr.f32.gmra.mrb[0].mxu0 %v692
        %v880 = vpop.f32.mrb[0].mxu0
        %v881 = vpop.f32.mrb[0].mxu0
        %882 = vmatprep.mubr.f32.mxu0 0.0
        %883 = vmatmul.mubr.f32.gmra.mrb[0].mxu0 %v693
        %v884 = vpop.f32.mrb[0].mxu0
        %v885 = vpop.f32.mrb[0].mxu0
        %886 = vmatprep.mubr.f32.mxu0 0.0
        %887 = vmatmul.mubr.f32.gmra.mrb[0].mxu0 %v694
        %v888 = vpop.f32.mrb[0].mxu0
        %v889 = vpop.f32.mrb[0].mxu0
        %890 = vmatprep.mubr.f32.mxu0 0.0
        %891 = vmatmul.mubr.f32.gmra.mrb[0].mxu0 %v695
        %v892 = vpop.f32.mrb[0].mxu0
        %v893 = vpop.f32.mrb[0].mxu0
        %894 = vmatprep.mubr.f32.mxu0 0.0
        %895 = vmatmul.mubr.f32.gmra.mrb[0].mxu0 %v696
        %v896 = vpop.f32.mrb[0].mxu0
        %v897 = vpop.f32.mrb[0].mxu0
        %898 = vmatprep.mubr.f32.mxu0 0.0
        %899 = vmatmul.mubr.f32.gmra.mrb[0].mxu0 %v697
        %v900 = vpop.f32.mrb[0].mxu0
        %v901 = vpop.f32.mrb[0].mxu0
        %902 = vmatprep.mubr.f32.mxu0 0.0
        %903 = vmatmul.mubr.f32.gmra.mrb[0].mxu0 %v698
        %v904 = vpop.f32.mrb[0].mxu0
        %v905 = vpop.f32.mrb[0].mxu0
        %906 = vmatprep.mubr.f32.mxu0 0.0
        %907 = vmatmul.mubr.f32.gmra.mrb[0].mxu0 %v699
        %v908 = vpop.f32.mrb[0].mxu0
        %v909 = vpop.f32.mrb[0].mxu0
        %910 = vdwg.mxu0
        %v911 = vxor.u32 %v848, 2147483648
        %v912 = vmul.f32 %v911, 1.442695
        %v913 = vpow.pop %v912
        %v914 = vadd.f32 %v913, 1.0
        %v915 = vrcp.pop %v914
        %v916 = vmul.f32 1.0, %v915
        %917 = vst.msk [vmem:[%s250] sm:$0xff] %vm278, %v916
      $region48: #{se_block.2} parent=39 // pred_fallthru
        _
      %p918 = scmp.lt.s32.totalorder %s20, 1
      %s919 = scalar_select %p918, %s20, 1
      %s920 = smul.addr %s919, 8
      %s921 = scalar_lea.vmem %s5, %s920
      // Predicated region
      $region49: #{se_block.2} parent=39 // pred_check
        %p922 = pneg %p158
      $region50: #{se_block.2} parent=39 // pred_check_branch
        %924 = sbr.rel (%p922) target = $region52
      $region51: #{se_block.2} parent=39 // pred_region
        _
      $region52: #{se_block.2} parent=39 // pred_fallthru
        _
    $region40: #{se_block.2} parent=5 // pred_fallthru
      _
    %p925 = scmp.le.s32.totalorder 2, %s11
    // Predicated region
    $region53: #{se_block.2} parent=5 // pred_check
      %p926 = pneg %p925
    $region54: #{se_block.2} parent=5 // pred_check_branch
      %928 = sbr.rel (%p926) target = $region56
    $region55: #{se_block.2} parent=5 // pred_region
      %s929 = ssub.s32 %s11, 2
      // Predicated region
      $region57: #{se_block.2} parent=55 // pred_check
        %p930 = pneg %p164
      $region58: #{se_block.2} parent=55 // pred_check_branch
        %932 = sbr.rel (%p930) target = $region60
      $region59: #{se_block.2} parent=55 // pred_region
        %p933 = scmp.lt.s32.totalorder %s22, 1
        %s934 = scalar_select %p933, %s22, 1
        %s935 = smul.addr %s934, 8
        %s936 = scalar_lea.vmem %s5, %s935
      $region60: #{se_block.2} parent=55 // pred_fallthru
        _
    $region56: #{se_block.2} parent=5 // pred_fallthru
      _
  $region6: #{se_block.2} parent=0 // loop_footer
    %s15 = sadd.s32 1, %s11
  $region7: #{se_block.2} parent=0 // loop_footer_branch
    %10 = sbr.rel target = $region3
  $region8: #{se_block.2} parent=0 // loop_exit
    _

</llo_original>
